<compile_context>
chip_gen: v7x
topology: tpu7x:2x2x1
jax: 0.10.0
libtpu: 0.0.40
codegen_flags: <defaults>
</compile_context>

<pallas_src>
import functools

import jax
import jax.numpy as jnp
from jax.experimental import pallas as pl
from jax.experimental.pallas import tpu as pltpu


def _round_up(x: int, m: int) -> int:
    return (x + m - 1) // m * m


def _ffn_kernel(x_ref, w1_ref, b1_ref, w2_ref, b2_ref, o_ref, acc_ref):
    """One (row-tile i, hidden-tile j) grid step.

    x_ref  : (TM, Dp)   token tile           (same block for every j)
    w1_ref : (Dp, TH)   slab of W1^T
    b1_ref : (1,  TH)   slab of b1
    w2_ref : (TH, Dp)   slab of W2^T
    b2_ref : (1,  Dp)   b2 (added once, in the finalize step)
    o_ref  : (TM, Dp)   output tile          (same block for every j)
    acc_ref: (TM, Dp)   float32 accumulator (VMEM scratch)
    """
    j = pl.program_id(1)

    @pl.when(j == 0)
    def _init():
        acc_ref[...] = jnp.zeros_like(acc_ref)

    # Linear 1 slab + bias + ReLU (MXU matmul, f32 accumulate).
    h = jnp.dot(x_ref[...], w1_ref[...], preferred_element_type=jnp.float32)
    h = jnp.maximum(h + b1_ref[...], 0.0)

    # Dropout (inference mode) == identity.
    # TODO(synk): training-mode dropout (pltpu.prng_* mask) intentionally
    #             omitted; it cannot match torch RNG bit-exactly.

    # Linear 2 slab, accumulated over the hidden axis.
    acc_ref[...] += jnp.dot(h.astype(w2_ref.dtype), w2_ref[...],
                            preferred_element_type=jnp.float32)

    @pl.when(j == pl.num_programs(1) - 1)
    def _finalize():
        o_ref[...] = (acc_ref[...] + b2_ref[...]).astype(o_ref.dtype)


def make_ffn_params(key, d_model, hidden, dtype=jnp.float32):
    """Create FeedForward parameters ONCE in kernel-friendly layout.

    PyTorch stores nn.Linear weights as (out_features, in_features); here they
    are stored already transposed ((in, out) row-major) and zero-padded so the
    last two dims are multiples of 128 lanes.  Doing this offline keeps the
    per-call path free of transposes and weight padding.
    """
    d_pad = _round_up(d_model, 128)
    h_pad = _round_up(hidden, 128)
    k1, k2, k3, k4 = jax.random.split(key, 4)
    bound1 = 1.0 / (d_model ** 0.5)
    bound2 = 1.0 / (hidden ** 0.5)
    w1_t = jnp.zeros((d_pad, h_pad), dtype).at[:d_model, :hidden].set(
        jax.random.uniform(k1, (d_model, hidden), dtype, -bound1, bound1))
    b1 = jnp.zeros((1, h_pad), dtype).at[:, :hidden].set(
        jax.random.uniform(k2, (1, hidden), dtype, -bound1, bound1))
    w2_t = jnp.zeros((h_pad, d_pad), dtype).at[:hidden, :d_model].set(
        jax.random.uniform(k3, (hidden, d_model), dtype, -bound2, bound2))
    b2 = jnp.zeros((1, d_pad), dtype).at[:, :d_model].set(
        jax.random.uniform(k4, (1, d_model), dtype, -bound2, bound2))
    return w1_t, b1, w2_t, b2


@functools.partial(jax.jit, static_argnames=("tm", "th"))
def feed_forward(x, w1_t, b1, w2_t, b2, *, tm=512, th=512):
    """Fused FeedForward: relu(x @ W1^T + b1) @ W2^T + b2.

    Dropout is identity, i.e. the module in eval/inference mode.

    x    : [..., d_model]
    w1_t : (d_model_pad, hidden_pad)   from make_ffn_params (pre-transposed, padded)
    b1   : (1, hidden_pad)
    w2_t : (hidden_pad, d_model_pad)
    b2   : (1, d_model_pad)
    tm   : row tile (tokens per grid step); shrunk automatically for small inputs
    th   : hidden tile (slab width of W1^T / slab height of W2^T)
    """
    d_model = x.shape[-1]
    d_pad, h_pad = w1_t.shape
    assert w2_t.shape == (h_pad, d_pad)
    assert b1.shape == (1, h_pad) and b2.shape == (1, d_pad)
    assert d_model <= d_pad

    lead = x.shape[:-1]
    xf = x.reshape(-1, d_model)
    n_rows = xf.shape[0]

    # ---- static tile selection -------------------------------------------
    # Row tile: multiple of 8 sublanes, never larger than the (padded) row
    # count; rows are padded to a multiple of tm so there is no ragged final
    # tile and no masked stores.
    tm_eff = min(_round_up(max(tm, 8), 8), _round_up(n_rows, 8))
    n_pad = _round_up(n_rows, tm_eff)

    # Hidden tile: largest multiple of 128 that divides hidden_pad and is <=
    # th.  Bounds resident weight VMEM regardless of model size (v7x: 64 MiB).
    n128 = h_pad // 128
    div = 1
    for d in range(1, n128 + 1):
        if n128 % d == 0 and d * 128 <= max(th, 128):
            div = d
    th_eff = div * 128

    grid = (n_pad // tm_eff, h_pad // th_eff)

    # ---- pad activations to the lane-dense tiled shape ---------------------
    if n_pad != n_rows or d_pad != d_model:
        xp = jnp.zeros((n_pad, d_pad), xf.dtype).at[:n_rows, :d_model].set(xf)
    else:
        xp = xf

    itemsize = jnp.dtype(x.dtype).itemsize
    # Double-buffered operand tiles + f32 accumulator, with margin; clamp to
    # v7x's 64 MiB physical VMEM (lower clamp = 32 MiB scoped default).
    tile_bytes = 2 * itemsize * (
        tm_eff * d_pad                # x tile
        + d_pad * th_eff + th_eff     # W1^T slab + b1 slab
        + th_eff * d_pad + d_pad      # W2^T slab + b2
        + tm_eff * d_pad              # out tile
    ) + 4 * tm_eff * d_pad            # accumulator scratch
    vmem_limit = int(min(max(2 * tile_bytes, 32 * 1024 * 1024),
                         64 * 1024 * 1024))

    flops = 4 * n_pad * d_pad * h_pad                 # two matmuls, 2*M*K*N each
    bytes_accessed = itemsize * (xp.size + w1_t.size + b1.size
                                 + w2_t.size + b2.size + n_pad * d_pad)

    out = pl.pallas_call(
        _ffn_kernel,
        out_shape=jax.ShapeDtypeStruct((n_pad, d_pad), x.dtype),
        grid_spec=pltpu.PrefetchScalarGridSpec(
            num_scalar_prefetch=0,
            grid=grid,
            in_specs=[
                pl.BlockSpec((tm_eff, d_pad), lambda i, j: (i, 0)),   # x tile
                pl.BlockSpec((d_pad, th_eff), lambda i, j: (0, j)),   # W1^T slab
                pl.BlockSpec((1, th_eff), lambda i, j: (0, j)),       # b1 slab
                pl.BlockSpec((th_eff, d_pad), lambda i, j: (j, 0)),   # W2^T slab
                pl.BlockSpec((1, d_pad), lambda i, j: (0, 0)),        # b2
            ],
            out_specs=pl.BlockSpec((tm_eff, d_pad), lambda i, j: (i, 0)),
            scratch_shapes=[pltpu.VMEM((tm_eff, d_pad), jnp.float32)],
        ),
        compiler_params=pltpu.CompilerParams(
            dimension_semantics=("parallel", "arbitrary"),
            vmem_limit_bytes=vmem_limit,
        ),
        cost_estimate=pl.CostEstimate(
            flops=int(flops), transcendentals=0,
            bytes_accessed=int(bytes_accessed)),
    )(xp, w1_t, b1, w2_t, b2)

    return out[:n_rows, :d_model].reshape(*lead, d_model)


def _reference(x, w1_t, b1, w2_t, b2):
    d_model = x.shape[-1]
    h = jnp.maximum(x @ w1_t[:d_model, :] + b1, 0.0)
    y = h @ w2_t + b2
    return y[..., :d_model]


if __name__ == "__main__":
    # Small shapes consistent with the module: batch=2, seq=8, d_model=32,
    # linear_layer_size (hidden) = 64.
    batch, seq, d_model, hidden = 2, 8, 32, 64

    key = jax.random.PRNGKey(0)
    kx, kp = jax.random.split(key)

    x = jax.random.normal(kx, (batch, seq, d_model), dtype=jnp.float32)
    w1_t, b1, w2_t, b2 = make_ffn_params(kp, d_model, hidden, dtype=jnp.float32)

    y = feed_forward(x, w1_t, b1, w2_t, b2, tm=512, th=512)
    jax.block_until_ready(y)

    y_ref = _reference(x, w1_t, b1, w2_t, b2)
    assert y.shape == x.shape
    assert jnp.allclose(y, y_ref, atol=1e-5, rtol=1e-5), "mismatch vs reference"

    print("KERNEL_OK")
</pallas_src>

<mosaic_0001>
module attributes {stable_mosaic.version = 11 : i64} {
  func.func @_ffn_kernel(%arg0: i32, %arg1: i32, %arg2: memref<16x128xf32, #tpu.memory_space<vmem>>, %arg3: memref<128x128xf32, #tpu.memory_space<vmem>>, %arg4: memref<1x128xf32, #tpu.memory_space<vmem>>, %arg5: memref<128x128xf32, #tpu.memory_space<vmem>>, %arg6: memref<1x128xf32, #tpu.memory_space<vmem>>, %arg7: memref<16x128xf32, #tpu.memory_space<vmem>>, %arg8: memref<16x128xf32, #tpu.memory_space<vmem>>) attributes {dimension_semantics = [#tpu.dimension_semantics<parallel>, #tpu.dimension_semantics<arbitrary>], iteration_bounds = array<i64: 1, 1>, scalar_prefetch = 0 : i64, scratch_operands = 1 : i64, tpu.core_type = #tpu.core_type<tc>, window_params = [{transform_indices = @transform_0, window_bounds = array<i64: 16, 128>}, {transform_indices = @transform_1, window_bounds = array<i64: 128, 128>}, {transform_indices = @transform_2, window_bounds = array<i64: 1, 128>}, {transform_indices = @transform_3, window_bounds = array<i64: 128, 128>}, {pipeline_mode = #tpu.pipeline_mode<synchronous>, transform_indices = @transform_4, window_bounds = array<i64: 1, 128>}, {transform_indices = @transform_5, window_bounds = array<i64: 16, 128>}]} {
    %c0_i32 = arith.constant 0 : i32
    %0 = arith.cmpi eq, %arg1, %c0_i32 : i32
    %1 = arith.extui %0 : i1 to i32
    %c0_i32_0 = arith.constant 0 : i32
    %2 = arith.cmpi ne, %1, %c0_i32_0 : i32
    scf.if %2 {
      %cst_16 = arith.constant 0.000000e+00 : f32
      %19 = vector.broadcast %cst_16 : f32 to vector<16x128xf32>
      %c0_17 = arith.constant 0 : index
      %c0_18 = arith.constant 0 : index
      %20 = vector.load %arg8[%c0_17, %c0_18] : memref<16x128xf32, #tpu.memory_space<vmem>>, vector<16x128xf32>
      tpu.vector_store %arg8[%c0_17, %c0_18], %19 {strides = array<i32>} : memref<16x128xf32, #tpu.memory_space<vmem>>, vector<16x128xf32>,
    } else {
    }
    %c0 = arith.constant 0 : index
    %c0_1 = arith.constant 0 : index
    %3 = vector.load %arg2[%c0, %c0_1] : memref<16x128xf32, #tpu.memory_space<vmem>>, vector<16x128xf32>
    %c0_2 = arith.constant 0 : index
    %c0_3 = arith.constant 0 : index
    %4 = vector.load %arg3[%c0_2, %c0_3] : memref<128x128xf32, #tpu.memory_space<vmem>>, vector<128x128xf32>
    %cst = arith.constant dense<0.000000e+00> : vector<16x128xf32>
    %5 = tpu.matmul %3, %4, %cst {dimension_numbers = #tpu.dot_dimension_numbers<[1], [0], [0], [1], [0, 0, 1, 1], [], []>} : vector<16x128xf32>, vector<128x128xf32>, vector<16x128xf32> -> vector<16x128xf32>
    %c0_4 = arith.constant 0 : index
    %c0_5 = arith.constant 0 : index
    %6 = vector.load %arg4[%c0_4, %c0_5] : memref<1x128xf32, #tpu.memory_space<vmem>>, vector<1x128xf32>
    %7 = vector.broadcast %6 : vector<1x128xf32> to vector<16x128xf32>
    %8 = arith.addf %5, %7 : vector<16x128xf32>
    %cst_6 = arith.constant 0.000000e+00 : f32
    %9 = vector.broadcast %cst_6 : f32 to vector<16x128xf32>
    %10 = arith.maximumf %8, %9 : vector<16x128xf32>
    %c0_7 = arith.constant 0 : index
    %c0_8 = arith.constant 0 : index
    %11 = vector.load %arg8[%c0_7, %c0_8] : memref<16x128xf32, #tpu.memory_space<vmem>>, vector<16x128xf32>
    %c0_9 = arith.constant 0 : index
    %c0_10 = arith.constant 0 : index
    %12 = vector.load %arg5[%c0_9, %c0_10] : memref<128x128xf32, #tpu.memory_space<vmem>>, vector<128x128xf32>
    %cst_11 = arith.constant dense<0.000000e+00> : vector<16x128xf32>
    %13 = tpu.matmul %10, %12, %cst_11 {dimension_numbers = #tpu.dot_dimension_numbers<[1], [0], [0], [1], [0, 0, 1, 1], [], []>} : vector<16x128xf32>, vector<128x128xf32>, vector<16x128xf32> -> vector<16x128xf32>
    %14 = arith.addf %11, %13 : vector<16x128xf32>
    %c0_12 = arith.constant 0 : index
    %c0_13 = arith.constant 0 : index
    %15 = vector.load %arg8[%c0_12, %c0_13] : memref<16x128xf32, #tpu.memory_space<vmem>>, vector<16x128xf32>
    tpu.vector_store %arg8[%c0_12, %c0_13], %14 {strides = array<i32>} : memref<16x128xf32, #tpu.memory_space<vmem>>, vector<16x128xf32>,
    %c0_i32_14 = arith.constant 0 : i32
    %16 = arith.cmpi eq, %arg1, %c0_i32_14 : i32
    %17 = arith.extui %16 : i1 to i32
    %c0_i32_15 = arith.constant 0 : i32
    %18 = arith.cmpi ne, %17, %c0_i32_15 : i32
    scf.if %18 {
      %c0_16 = arith.constant 0 : index
      %c0_17 = arith.constant 0 : index
      %19 = vector.load %arg8[%c0_16, %c0_17] : memref<16x128xf32, #tpu.memory_space<vmem>>, vector<16x128xf32>
      %c0_18 = arith.constant 0 : index
      %c0_19 = arith.constant 0 : index
      %20 = vector.load %arg6[%c0_18, %c0_19] : memref<1x128xf32, #tpu.memory_space<vmem>>, vector<1x128xf32>
      %21 = vector.broadcast %20 : vector<1x128xf32> to vector<16x128xf32>
      %22 = arith.addf %19, %21 : vector<16x128xf32>
      %c0_20 = arith.constant 0 : index
      %c0_21 = arith.constant 0 : index
      %23 = vector.load %arg7[%c0_20, %c0_21] : memref<16x128xf32, #tpu.memory_space<vmem>>, vector<16x128xf32>
      tpu.vector_store %arg7[%c0_20, %c0_21], %22 {strides = array<i32>} : memref<16x128xf32, #tpu.memory_space<vmem>>, vector<16x128xf32>,
    } else {
    }
    return
  }
  func.func @transform_0(%arg0: i32, %arg1: i32) -> (i32, i32) {
    %c0_i32 = arith.constant 0 : i32
    %c0_i32_0 = arith.constant 0 : i32
    return %arg0, %c0_i32 : i32, i32
  }
  func.func @transform_1(%arg0: i32, %arg1: i32) -> (i32, i32) {
    %c0_i32 = arith.constant 0 : i32
    %c0_i32_0 = arith.constant 0 : i32
    return %c0_i32, %arg1 : i32, i32
  }
  func.func @transform_2(%arg0: i32, %arg1: i32) -> (i32, i32) {
    %c0_i32 = arith.constant 0 : i32
    %c0_i32_0 = arith.constant 0 : i32
    return %c0_i32, %arg1 : i32, i32
  }
  func.func @transform_3(%arg0: i32, %arg1: i32) -> (i32, i32) {
    %c0_i32 = arith.constant 0 : i32
    %c0_i32_0 = arith.constant 0 : i32
    return %arg1, %c0_i32 : i32, i32
  }
  func.func @transform_4(%arg0: i32, %arg1: i32) -> (i32, i32) {
    %c0_i32 = arith.constant 0 : i32
    %c0_i32_0 = arith.constant 0 : i32
    %c0_i32_1 = arith.constant 0 : i32
    return %c0_i32, %c0_i32_0 : i32, i32
  }
  func.func @transform_5(%arg0: i32, %arg1: i32) -> (i32, i32) {
    %c0_i32 = arith.constant 0 : i32
    %c0_i32_0 = arith.constant 0 : i32
    return %arg0, %c0_i32 : i32, i32
  }
}

</mosaic_0001>

<llo_original>
// kernel: feed_forward.1
$region0: #{feed_forward.1}
  #allocation0 [shape = 'u32[]', space=smem, size = 0x4, offset = 0x4, fixed_abs, tag = 'smem constant byte address 0x4 - core index']
  #allocation1 [shape = 'u32[144,128]{1,0:T(1,128)}', space=vmem, size = 0x12000, scoped, tag = 'internal scratch']
  #allocation2 [shape = 'f32[16,128]{1,0:T(8,128)}', space=vmem, size = 0x2000, scoped, tag = 'scratch operand']
  %s0 = inlined_call_operand.vmem [shape: f32[16,128], index: 0, kind: input, shape index: {}]
  %s1 = inlined_call_operand.hbm [shape: f32[128,128], index: 1, kind: input, shape index: {}]
  %s2 = inlined_call_operand.vmem [shape: f32[1,128], index: 2, kind: input, shape index: {}]
  %s3 = inlined_call_operand.hbm [shape: f32[128,128], index: 3, kind: input, shape index: {}]
  %s4 = inlined_call_operand.vmem [shape: f32[1,128], index: 4, kind: input, shape index: {}]
  %s5 = inlined_call_operand.vmem [shape: f32[16,128], index: 5, kind: output, shape index: {}]
  %s6 = sld [smem:[#allocation0]]
  $region46: #{feed_forward.1} parent=0
    _
  %s8 = ssub.s32 1, %s6
  %s9 = scalar_select 0, %s8, %s6
  $region1: #{feed_forward.1} parent=0
    #allocation3 [shape = 'u8[65536]{0}', space=vmem, size = 0x10000, scoped, tag = 'input window, operand 1, single buffered']
    #allocation4 [shape = 's32[1]{0}', space=sflag, size = 0x4, scoped, tag = 'scoped memory for feed_forward.1']
    #allocation5 [shape = 'u8[65536]{0}', space=vmem, size = 0x10000, scoped, tag = 'input window, operand 3, single buffered']
    #allocation6 [shape = 's32[1]{0}', space=sflag, size = 0x4, scoped, tag = 'scoped memory for feed_forward.1']
    %10 = vsyncpa [#allocation4], 0
    %11 = vsyncpa [#allocation6], 0
    // Predicated region
    $region2: #{feed_forward.1} parent=1 // pred_check
      _
    $region3: #{feed_forward.1} parent=1 // pred_check_branch
      %13 = sbr.rel (0) target = $region5
    $region4: #{feed_forward.1} parent=1 // pred_region
      _
    $region5: #{feed_forward.1} parent=1 // pred_fallthru
      _
    // Predicated region
    $region6: #{feed_forward.1} parent=1 // pred_check
      _
    $region7: #{feed_forward.1} parent=1 // pred_check_branch
      %15 = sbr.rel (0) target = $region9
    $region8: #{feed_forward.1} parent=1 // pred_region
      %s17 = ssub.s32 2048, 2048
      %18 = vsyncadd [#allocation4], %s17
      %s19 = sshll.u32 [#allocation3], 4
      %s20 = int_to_ptr.vmem [resolvable:$true] %s19
      %25 = dma.hbm_to_vmem [thread:$0]  %s1, 2048, %s20, [#allocation4], 128, 128, 8
    $region9: #{feed_forward.1} parent=1 // pred_fallthru
      _
    // Predicated region
    $region10: #{feed_forward.1} parent=1 // pred_check
      _
    $region11: #{feed_forward.1} parent=1 // pred_check_branch
      %27 = sbr.rel (0) target = $region13
    $region12: #{feed_forward.1} parent=1 // pred_region
      _
    $region13: #{feed_forward.1} parent=1 // pred_fallthru
      _
    // Predicated region
    $region14: #{feed_forward.1} parent=1 // pred_check
      _
    $region15: #{feed_forward.1} parent=1 // pred_check_branch
      %29 = sbr.rel (0) target = $region17
    $region16: #{feed_forward.1} parent=1 // pred_region
      %s31 = ssub.s32 2048, 2048
      %32 = vsyncadd [#allocation6], %s31
      %s33 = sshll.u32 [#allocation5], 4
      %s34 = int_to_ptr.vmem [resolvable:$true] %s33
      %39 = dma.hbm_to_vmem [thread:$0]  %s3, 2048, %s34, [#allocation6], 128, 128, 8
    $region17: #{feed_forward.1} parent=1 // pred_fallthru
      _
    // Predicated region
    $region18: #{feed_forward.1} parent=1 // pred_check
      _
    $region19: #{feed_forward.1} parent=1 // pred_check_branch
      %41 = sbr.rel (0) target = $region21
    $region20: #{feed_forward.1} parent=1 // pred_region
      _
    $region21: #{feed_forward.1} parent=1 // pred_fallthru
      _
    // Predicated region
    $region22: #{feed_forward.1} parent=1 // pred_check
      _
    $region23: #{feed_forward.1} parent=1 // pred_check_branch
      %43 = sbr.rel (0) target = $region25
    $region24: #{feed_forward.1} parent=1 // pred_region
      %44 = dma.done [#allocation4], 2048
    $region25: #{feed_forward.1} parent=1 // pred_fallthru
      _
    // Predicated region
    $region26: #{feed_forward.1} parent=1 // pred_check
      _
    $region27: #{feed_forward.1} parent=1 // pred_check_branch
      %46 = sbr.rel (0) target = $region29
    $region28: #{feed_forward.1} parent=1 // pred_region
      %47 = dma.done [#allocation6], 2048
    $region29: #{feed_forward.1} parent=1 // pred_fallthru
      _
    %p48 = scmp.eq.s32.totalorder 0, 0
    // Predicated region
    $region30: #{feed_forward.1} parent=1 // pred_check
      %p49 = pneg %p48
    $region31: #{feed_forward.1} parent=1 // pred_check_branch
      %51 = sbr.rel (%p49) target = $region33
    $region32: #{feed_forward.1} parent=1 // pred_region
      %52 = vst [vmem:[#allocation2] sm:$0xff] 0.0
      %53 = vst [vmem:[#allocation2 + $0x8] sm:$0xff] 0.0
    $region33: #{feed_forward.1} parent=1 // pred_fallthru
      _
    %v54 = vld [vmem:[%s0] sm:$0xff]
    %v55 = vld [vmem:[%s0 + $0x8] sm:$0xff]
    %v56 = vld [vmem:[#allocation3] sm:$0xff]
    %v57 = vld [vmem:[#allocation3 + $0x8] sm:$0xff]
    %v58 = vld [vmem:[#allocation3 + $0x10] sm:$0xff]
    %v59 = vld [vmem:[#allocation3 + $0x18] sm:$0xff]
    %v60 = vld [vmem:[#allocation3 + $0x20] sm:$0xff]
    %v61 = vld [vmem:[#allocation3 + $0x28] sm:$0xff]
    %v62 = vld [vmem:[#allocation3 + $0x30] sm:$0xff]
    %v63 = vld [vmem:[#allocation3 + $0x38] sm:$0xff]
    %v64 = vld [vmem:[#allocation3 + $0x40] sm:$0xff]
    %v65 = vld [vmem:[#allocation3 + $0x48] sm:$0xff]
    %v66 = vld [vmem:[#allocation3 + $0x50] sm:$0xff]
    %v67 = vld [vmem:[#allocation3 + $0x58] sm:$0xff]
    %v68 = vld [vmem:[#allocation3 + $0x60] sm:$0xff]
    %v69 = vld [vmem:[#allocation3 + $0x68] sm:$0xff]
    %v70 = vld [vmem:[#allocation3 + $0x70] sm:$0xff]
    %v71 = vld [vmem:[#allocation3 + $0x78] sm:$0xff]
    %v72 = vld [vmem:[%s2] sm:$0x1]
    %v74 = vlaneseq
    %v75 = vshrl.u32 %v74, 7
    %v76 = vsub.s32 0, %v75
    %v77 = vrot.slane %v72, %v76
    %79 = vmatprep.subr.mxu0 0.0
    %80 = vmatpush1.msra.mxu0 %v56
    %81 = vmatprep.subr.mxu0 0.0
    %82 = vmatpush1.msra.mxu0 %v57
    %83 = vmatprep.subr.mxu0 0.0
    %84 = vmatpush1.msra.mxu0 %v58
    %85 = vmatprep.subr.mxu0 0.0
    %86 = vmatpush1.msra.mxu0 %v59
    %87 = vmatprep.subr.mxu0 0.0
    %88 = vmatpush1.msra.mxu0 %v60
    %89 = vmatprep.subr.mxu0 0.0
    %90 = vmatpush1.msra.mxu0 %v61
    %91 = vmatprep.subr.mxu0 0.0
    %92 = vmatpush1.msra.mxu0 %v62
    %93 = vmatprep.subr.mxu0 0.0
    %94 = vmatpush1.msra.mxu0 %v63
    %95 = vmatprep.subr.mxu0 0.0
    %96 = vmatpush1.msra.mxu0 %v64
    %97 = vmatprep.subr.mxu0 0.0
    %98 = vmatpush1.msra.mxu0 %v65
    %99 = vmatprep.subr.mxu0 0.0
    %100 = vmatpush1.msra.mxu0 %v66
    %101 = vmatprep.subr.mxu0 0.0
    %102 = vmatpush1.msra.mxu0 %v67
    %103 = vmatprep.subr.mxu0 0.0
    %104 = vmatpush1.msra.mxu0 %v68
    %105 = vmatprep.subr.mxu0 0.0
    %106 = vmatpush1.msra.mxu0 %v69
    %107 = vmatprep.subr.mxu0 0.0
    %108 = vmatpush1.msra.mxu0 %v70
    %109 = vmatprep.subr.mxu0 0.0
    %110 = vmatpush1.msra.mxu0 %v71
    %111 = vmatprep.subr.mxu0 0.0
    %112 = vmatpush1.msra.mxu0 0.0
    %113 = vmatprep.subr.mxu0 0.0
    %114 = vmatpush1.msra.mxu0 0.0
    %115 = vmatprep.subr.mxu0 0.0
    %116 = vmatpush1.msra.mxu0 0.0
    %117 = vmatprep.subr.mxu0 0.0
    %118 = vmatpush1.msra.mxu0 0.0
    %119 = vmatprep.subr.mxu0 0.0
    %120 = vmatpush1.msra.mxu0 0.0
    %121 = vmatprep.subr.mxu0 0.0
    %122 = vmatpush1.msra.mxu0 0.0
    %123 = vmatprep.subr.mxu0 0.0
    %124 = vmatpush1.msra.mxu0 0.0
    %125 = vmatprep.subr.mxu0 0.0
    %126 = vmatpush1.msra.mxu0 0.0
    %127 = vmatprep.subr.mxu0 0.0
    %128 = vmatpush1.msra.mxu0 0.0
    %129 = vmatprep.subr.mxu0 0.0
    %130 = vmatpush1.msra.mxu0 0.0
    %131 = vmatprep.subr.mxu0 0.0
    %132 = vmatpush1.msra.mxu0 0.0
    %133 = vmatprep.subr.mxu0 0.0
    %134 = vmatpush1.msra.mxu0 0.0
    %135 = vmatprep.subr.mxu0 0.0
    %136 = vmatpush1.msra.mxu0 0.0
    %137 = vmatprep.subr.mxu0 0.0
    %138 = vmatpush1.msra.mxu0 0.0
    %139 = vmatprep.subr.mxu0 0.0
    %140 = vmatpush1.msra.mxu0 0.0
    %141 = vmatprep.subr.mxu0 0.0
    %142 = vmatpush1.msra.mxu0 0.0
    %143 = vmatprep.mubr.f32.mxu0 0.0
    %144 = vmatmul.mubr.f32.gmra.mrb[0].mxu0 %v54
    %v145 = vpop.f32.mrb[0].mxu0
    %v146 = vadd.f32 %v77, %v145
    %v147 = vpop.f32.mrb[0].mxu0
    %148 = vmatprep.mubr.f32.mxu0 0.0
    %149 = vmatmul.mubr.f32.gmra.mrb[0].mxu0 %v55
    %v150 = vpop.f32.mrb[0].mxu0
    %v151 = vadd.f32 %v77, %v150
    %v152 = vpop.f32.mrb[0].mxu0
    %153 = vdwg.mxu0
    %v154 = vmax.f32 %v146, 0.0
    %v155 = vmax.f32 %v151, 0.0
    %v156 = vld [vmem:[#allocation2] sm:$0xff]
    %v157 = vld [vmem:[#allocation2 + $0x8] sm:$0xff]
    %v158 = vld [vmem:[#allocation5] sm:$0xff]
    %v159 = vld [vmem:[#allocation5 + $0x8] sm:$0xff]
    %v160 = vld [vmem:[#allocation5 + $0x10] sm:$0xff]
    %v161 = vld [vmem:[#allocation5 + $0x18] sm:$0xff]
    %v162 = vld [vmem:[#allocation5 + $0x20] sm:$0xff]
    %v163 = vld [vmem:[#allocation5 + $0x28] sm:$0xff]
    %v164 = vld [vmem:[#allocation5 + $0x30] sm:$0xff]
    %v165 = vld [vmem:[#allocation5 + $0x38] sm:$0xff]
    %v166 = vld [vmem:[#allocation5 + $0x40] sm:$0xff]
    %v167 = vld [vmem:[#allocation5 + $0x48] sm:$0xff]
    %v168 = vld [vmem:[#allocation5 + $0x50] sm:$0xff]
    %v169 = vld [vmem:[#allocation5 + $0x58] sm:$0xff]
    %v170 = vld [vmem:[#allocation5 + $0x60] sm:$0xff]
    %v171 = vld [vmem:[#allocation5 + $0x68] sm:$0xff]
    %v172 = vld [vmem:[#allocation5 + $0x70] sm:$0xff]
    %v173 = vld [vmem:[#allocation5 + $0x78] sm:$0xff]
    %174 = vmatprep.subr.mxu0 0.0
    %175 = vmatpush1.msra.mxu0 %v158
    %176 = vmatprep.subr.mxu0 0.0
    %177 = vmatpush1.msra.mxu0 %v159
    %178 = vmatprep.subr.mxu0 0.0
    %179 = vmatpush1.msra.mxu0 %v160
    %180 = vmatprep.subr.mxu0 0.0
    %181 = vmatpush1.msra.mxu0 %v161
    %182 = vmatprep.subr.mxu0 0.0
    %183 = vmatpush1.msra.mxu0 %v162
    %184 = vmatprep.subr.mxu0 0.0
    %185 = vmatpush1.msra.mxu0 %v163
    %186 = vmatprep.subr.mxu0 0.0
    %187 = vmatpush1.msra.mxu0 %v164
    %188 = vmatprep.subr.mxu0 0.0
    %189 = vmatpush1.msra.mxu0 %v165
    %190 = vmatprep.subr.mxu0 0.0
    %191 = vmatpush1.msra.mxu0 %v166
    %192 = vmatprep.subr.mxu0 0.0
    %193 = vmatpush1.msra.mxu0 %v167
    %194 = vmatprep.subr.mxu0 0.0
    %195 = vmatpush1.msra.mxu0 %v168
    %196 = vmatprep.subr.mxu0 0.0
    %197 = vmatpush1.msra.mxu0 %v169
    %198 = vmatprep.subr.mxu0 0.0
    %199 = vmatpush1.msra.mxu0 %v170
    %200 = vmatprep.subr.mxu0 0.0
    %201 = vmatpush1.msra.mxu0 %v171
    %202 = vmatprep.subr.mxu0 0.0
    %203 = vmatpush1.msra.mxu0 %v172
    %204 = vmatprep.subr.mxu0 0.0
    %205 = vmatpush1.msra.mxu0 %v173
    %206 = vmatprep.subr.mxu0 0.0
    %207 = vmatpush1.msra.mxu0 0.0
    %208 = vmatprep.subr.mxu0 0.0
    %209 = vmatpush1.msra.mxu0 0.0
    %210 = vmatprep.subr.mxu0 0.0
    %211 = vmatpush1.msra.mxu0 0.0
    %212 = vmatprep.subr.mxu0 0.0
    %213 = vmatpush1.msra.mxu0 0.0
    %214 = vmatprep.subr.mxu0 0.0
    %215 = vmatpush1.msra.mxu0 0.0
    %216 = vmatprep.subr.mxu0 0.0
    %217 = vmatpush1.msra.mxu0 0.0
    %218 = vmatprep.subr.mxu0 0.0
    %219 = vmatpush1.msra.mxu0 0.0
    %220 = vmatprep.subr.mxu0 0.0
    %221 = vmatpush1.msra.mxu0 0.0
    %222 = vmatprep.subr.mxu0 0.0
    %223 = vmatpush1.msra.mxu0 0.0
    %224 = vmatprep.subr.mxu0 0.0
    %225 = vmatpush1.msra.mxu0 0.0
    %226 = vmatprep.subr.mxu0 0.0
    %227 = vmatpush1.msra.mxu0 0.0
    %228 = vmatprep.subr.mxu0 0.0
    %229 = vmatpush1.msra.mxu0 0.0
    %230 = vmatprep.subr.mxu0 0.0
    %231 = vmatpush1.msra.mxu0 0.0
    %232 = vmatprep.subr.mxu0 0.0
    %233 = vmatpush1.msra.mxu0 0.0
    %234 = vmatprep.subr.mxu0 0.0
    %235 = vmatpush1.msra.mxu0 0.0
    %236 = vmatprep.subr.mxu0 0.0
    %237 = vmatpush1.msra.mxu0 0.0
    %238 = vmatprep.mubr.f32.mxu0 0.0
    %239 = vmatmul.mubr.f32.gmra.mrb[0].mxu0 %v154
    %v240 = vpop.f32.mrb[0].mxu0
    %v241 = vadd.f32 0.0, %v240
    %v242 = vpop.f32.mrb[0].mxu0
    %243 = vmatprep.mubr.f32.mxu0 0.0
    %244 = vmatmul.mubr.f32.gmra.mrb[0].mxu0 %v155
    %v245 = vpop.f32.mrb[0].mxu0
    %v246 = vadd.f32 0.0, %v245
    %v247 = vpop.f32.mrb[0].mxu0
    %248 = vdwg.mxu0
    %v249 = vadd.f32 %v156, %v241
    %v250 = vadd.f32 %v157, %v246
    %251 = vst [vmem:[#allocation2] sm:$0xff] %v249
    %252 = vst [vmem:[#allocation2 + $0x8] sm:$0xff] %v250
    // Predicated region
    $region34: #{feed_forward.1} parent=1 // pred_check
      %p253 = pneg %p48
    $region35: #{feed_forward.1} parent=1 // pred_check_branch
      %255 = sbr.rel (%p253) target = $region37
    $region36: #{feed_forward.1} parent=1 // pred_region
      %v256 = vld [vmem:[#allocation2] sm:$0xff]
      %v257 = vld [vmem:[#allocation2 + $0x8] sm:$0xff]
      %v258 = vld [vmem:[%s4] sm:$0x1]
      %v260 = vlaneseq
      %v261 = vshrl.u32 %v260, 7
      %v262 = vsub.s32 0, %v261
      %v263 = vrot.slane %v258, %v262
      %v265 = vadd.f32 %v256, %v263
      %v266 = vadd.f32 %v257, %v263
      %267 = vst [vmem:[%s5] sm:$0xff] %v265
      %268 = vst [vmem:[%s5 + $0x8] sm:$0xff] %v266
    $region37: #{feed_forward.1} parent=1 // pred_fallthru
      _
    // Predicated region
    $region38: #{feed_forward.1} parent=1 // pred_check
      _
    $region39: #{feed_forward.1} parent=1 // pred_check_branch
      %270 = sbr.rel (0) target = $region41
    $region40: #{feed_forward.1} parent=1 // pred_region
      _
    $region41: #{feed_forward.1} parent=1 // pred_fallthru
      _
    // Predicated region
    $region42: #{feed_forward.1} parent=1 // pred_check
      _
    $region43: #{feed_forward.1} parent=1 // pred_check_branch
      %272 = sbr.rel (0) target = $region45
    $region44: #{feed_forward.1} parent=1 // pred_region
      _
    $region45: #{feed_forward.1} parent=1 // pred_fallthru
      _
    %273 = vsyncpa [#allocation4], 1
    %274 = vsyncpa [#allocation6], 1

</llo_original>
